<compile_context>
chip_gen: v7x
topology: tpu7x:2x2x1
jax: 0.10.0
libtpu: 0.0.40
codegen_flags: <defaults>
</compile_context>

<pallas_src>
import math

import jax
import jax.numpy as jnp
from jax.experimental import pallas as pl
from jax.experimental.pallas import tpu as pltpu

_EPS_DIR = 1e-10     # guard for zero direction components
_EPS_SPAN = 1e-6     # guard for far <= near (ray misses AABB / grazing hit)

_IN_ROWS = 3 + 3 + 1 + 1 + 3 + 3   # o, d, weights_sum, depth_raw, image, bg
_OUT_ROWS = 3 + 1 + 1 + 1          # image, depth, nears, fars


def _round_up(x: int, m: int) -> int:
    return ((x + m - 1) // m) * m


def _num_tensorcores() -> int:
    # v7x has 2 TensorCores per chip; v5e/v6e (and CPU interpret) have 1.
    try:
        kind = (getattr(jax.devices()[0], "device_kind", "") or "").lower()
        if "v7" in kind:
            return 2
    except Exception:
        pass
    return 1


def _make_renderer_kernel(bound: float, min_near: float):
    # aabb_train buffer from __init__: [-b, -b/2, -b, b, b/2, b]
    mins = (-bound, -bound / 2.0, -bound)
    maxs = (bound, bound / 2.0, bound)

    def kernel(ro_ref, rd_ref, ws_ref, dep_ref, img_ref, bg_ref,
               img_out, dep_out, near_out, far_out):
        near = None
        far = None
        # Per-coordinate slab test: Python-scalar immediates (no captured
        # jnp constants) + pairwise min/max (no sublane reductions).
        for c in range(3):
            o_c = ro_ref[c:c + 1, :]          # (1, T)
            d_c = rd_ref[c:c + 1, :]          # (1, T)
            d_safe = jnp.where(jnp.abs(d_c) < _EPS_DIR,
                               jnp.where(d_c >= 0.0, _EPS_DIR, -_EPS_DIR),
                               d_c)
            rinv = 1.0 / d_safe
            t0 = (mins[c] - o_c) * rinv
            t1 = (maxs[c] - o_c) * rinv
            tmin_c = jnp.minimum(t0, t1)
            tmax_c = jnp.maximum(t0, t1)
            near = tmin_c if near is None else jnp.maximum(near, tmin_c)
            far = tmax_c if far is None else jnp.minimum(far, tmax_c)

        near = jnp.maximum(near, min_near)          # (1, T), min_near clamp
        far = jnp.maximum(far, near + _EPS_SPAN)    # miss/grazing guard

        # ---- background blend + clamp ----
        ws = ws_ref[...]                                             # (1, T)
        image = jnp.clip(img_ref[...] + (1.0 - ws) * bg_ref[...], 0.0, 1.0)

        # ---- depth normalization ----
        depth = jnp.maximum(dep_ref[...] - near, 0.0) / (far - near)

        # Full-ref, full-lane-width stores.
        img_out[...] = image
        dep_out[...] = depth
        near_out[...] = near
        far_out[...] = far

    return kernel


def nerf_renderer_run(rays_o, rays_d, weights_sum, depth_raw, image_raw,
                      bg_color, *, bound=1.0, min_near=0.2, tile=131072):
    """Pallas implementation of the defined portion of NeRFRenderer.run_cuda.

    rays_o, rays_d : (..., 3)   ray origins / directions
    weights_sum    : (...,)     accumulated weights per ray (from compositing)
    depth_raw      : (...,)     unnormalized depth per ray
    image_raw      : (..., 3)   pre-background composited color per ray
    bg_color       : (..., 3)   per-ray background color (the `use_bc` path)
    Returns dict with 'image', 'depth', 'weights_sum', 'nears', 'fars'.
    """
    prefix = rays_o.shape[:-1]
    n = math.prod(prefix) if prefix else 1

    # Lane-dense layout: ray axis last (on lanes).  Inputs are passed as six
    # separate arrays — no fused-slab concat and no jnp.pad copy in HBM.
    ro = rays_o.reshape(n, 3).astype(jnp.float32).T      # (3, n)
    rd = rays_d.reshape(n, 3).astype(jnp.float32).T      # (3, n)
    ws = weights_sum.reshape(1, n).astype(jnp.float32)   # (1, n)
    dp = depth_raw.reshape(1, n).astype(jnp.float32)     # (1, n)
    im = image_raw.reshape(n, 3).astype(jnp.float32).T   # (3, n)
    bg = bg_color.reshape(n, 3).astype(jnp.float32).T    # (3, n)

    # Tile selection: large lane tiles to amortize per-step overhead; ragged
    # tail handled by Pallas block masking (cdiv grid).  Only split into 2
    # steps when the chip actually has 2 TensorCores (v7x).
    t = _round_up(max(128, min(int(tile), _round_up(n, 128))), 128)
    if _num_tensorcores() >= 2 and pl.cdiv(n, t) < 2 and n > 128:
        t = _round_up(pl.cdiv(n, 2), 128)
    grid = (pl.cdiv(n, t),)

    kernel = _make_renderer_kernel(float(bound), float(min_near))

    # VMEM budget: double-buffered IO blocks + headroom for elementwise
    # temporaries; capped to stay comfortably inside v7x's 64 MiB per-TC VMEM.
    pipeline_bytes = 2 * (_IN_ROWS + _OUT_ROWS) * 4 * t
    vmem_limit = int(min(pipeline_bytes + (28 << 20), 56 << 20))

    cost = pl.CostEstimate(
        flops=40 * n,
        transcendentals=0,
        bytes_accessed=(_IN_ROWS + _OUT_ROWS) * 4 * n,
    )

    def row_spec(rows):
        return pl.BlockSpec((rows, t), lambda i: (0, i))

    img_o, dep_o, near_o, far_o = pl.pallas_call(
        kernel,
        out_shape=(
            jax.ShapeDtypeStruct((3, n), jnp.float32),
            jax.ShapeDtypeStruct((1, n), jnp.float32),
            jax.ShapeDtypeStruct((1, n), jnp.float32),
            jax.ShapeDtypeStruct((1, n), jnp.float32),
        ),
        grid_spec=pltpu.PrefetchScalarGridSpec(
            num_scalar_prefetch=0,
            grid=grid,
            in_specs=[row_spec(3), row_spec(3), row_spec(1), row_spec(1),
                      row_spec(3), row_spec(3)],
            out_specs=[row_spec(3), row_spec(1), row_spec(1), row_spec(1)],
        ),
        compiler_params=pltpu.CompilerParams(
            dimension_semantics=("parallel",),
            vmem_limit_bytes=vmem_limit,
        ),
        cost_estimate=cost,
    )(ro, rd, ws, dp, im, bg)

    image = img_o.T.reshape(prefix + (3,))
    depth = dep_o.reshape(prefix)
    nears = near_o.reshape(prefix)
    fars = far_o.reshape(prefix)

    return {
        "image": image,
        "depth": depth,
        "weights_sum": weights_sum.reshape(prefix),
        "nears": nears,
        "fars": fars,
    }


def _reference(rays_o, rays_d, weights_sum, depth_raw, image_raw, bg_color,
               bound=1.0, min_near=0.2):
    """Pure-JAX reference mirroring the PyTorch math (same epsilon guards)."""
    aabb_min = jnp.array([-bound, -bound / 2.0, -bound], jnp.float32)
    aabb_max = jnp.array([bound, bound / 2.0, bound], jnp.float32)
    o = rays_o.reshape(-1, 3).astype(jnp.float32)
    d = rays_d.reshape(-1, 3).astype(jnp.float32)
    d_safe = jnp.where(jnp.abs(d) < _EPS_DIR,
                       jnp.where(d >= 0.0, _EPS_DIR, -_EPS_DIR), d)
    rinv = 1.0 / d_safe
    t0 = (aabb_min - o) * rinv
    t1 = (aabb_max - o) * rinv
    near = jnp.maximum(jnp.max(jnp.minimum(t0, t1), axis=-1), min_near)
    far = jnp.min(jnp.maximum(t0, t1), axis=-1)
    far = jnp.maximum(far, near + _EPS_SPAN)
    ws = weights_sum.reshape(-1)
    img = image_raw.reshape(-1, 3) + (1.0 - ws)[:, None] * bg_color.reshape(-1, 3)
    img = jnp.clip(img, 0.0, 1.0)
    depth = jnp.maximum(depth_raw.reshape(-1) - near, 0.0) / (far - near)
    return (img.reshape(image_raw.shape),
            depth.reshape(depth_raw.shape),
            near.reshape(depth_raw.shape),
            far.reshape(depth_raw.shape))


if __name__ == "__main__":
    # Module hyperparameters (deterministic, from __init__ defaults)
    bound = 1.0
    min_near = 0.2
    cascade = 1 + math.ceil(math.log2(bound)) if bound > 1 else 1  # = 1 here

    key = jax.random.PRNGKey(0)
    k0, k1, k2, k3, k4, k5 = jax.random.split(key, 6)

    B, N = 2, 128  # prefix = (B, N); 256 total rays
    rays_o = jax.random.uniform(k0, (B, N, 3), jnp.float32, -0.2, 0.2)
    rays_d = jax.random.normal(k1, (B, N, 3), jnp.float32)
    rays_d = rays_d / jnp.linalg.norm(rays_d, axis=-1, keepdims=True)
    weights_sum = jax.random.uniform(k2, (B, N), jnp.float32, 0.0, 1.0)
    depth_raw = jax.random.uniform(k3, (B, N), jnp.float32, 0.2, 1.5)
    image_raw = jax.random.uniform(k4, (B, N, 3), jnp.float32, 0.0, 1.0)
    bg_color = jax.random.uniform(k5, (B, N, 3), jnp.float32, 0.0, 1.0)

    out = nerf_renderer_run(rays_o, rays_d, weights_sum, depth_raw, image_raw,
                            bg_color, bound=bound, min_near=min_near)
    jax.block_until_ready(out)

    ref_img, ref_depth, ref_near, ref_far = _reference(
        rays_o, rays_d, weights_sum, depth_raw, image_raw, bg_color,
        bound, min_near)

    assert out["image"].shape == (B, N, 3)
    assert out["depth"].shape == (B, N)
    assert jnp.allclose(out["image"], ref_img, atol=1e-5, rtol=1e-5)
    assert jnp.allclose(out["depth"], ref_depth, atol=1e-5, rtol=1e-5)
    assert jnp.allclose(out["nears"], ref_near, atol=1e-5, rtol=1e-5)
    assert jnp.allclose(out["fars"], ref_far, atol=1e-5, rtol=1e-5)

    print("KERNEL_OK")
</pallas_src>

<mosaic_0001>
module attributes {stable_mosaic.version = 11 : i64} {
  func.func @kernel(%arg0: i32, %arg1: memref<3x256xf32, #tpu.memory_space<vmem>>, %arg2: memref<3x256xf32, #tpu.memory_space<vmem>>, %arg3: memref<1x256xf32, #tpu.memory_space<vmem>>, %arg4: memref<1x256xf32, #tpu.memory_space<vmem>>, %arg5: memref<3x256xf32, #tpu.memory_space<vmem>>, %arg6: memref<3x256xf32, #tpu.memory_space<vmem>>, %arg7: memref<3x256xf32, #tpu.memory_space<vmem>>, %arg8: memref<1x256xf32, #tpu.memory_space<vmem>>, %arg9: memref<1x256xf32, #tpu.memory_space<vmem>>, %arg10: memref<1x256xf32, #tpu.memory_space<vmem>>) attributes {dimension_semantics = [#tpu.dimension_semantics<parallel>], iteration_bounds = array<i64: 1>, scalar_prefetch = 0 : i64, scratch_operands = 0 : i64, tpu.core_type = #tpu.core_type<tc>, window_params = [{transform_indices = @transform_0, window_bounds = array<i64: 3, 256>}, {transform_indices = @transform_1, window_bounds = array<i64: 3, 256>}, {transform_indices = @transform_2, window_bounds = array<i64: 1, 256>}, {transform_indices = @transform_3, window_bounds = array<i64: 1, 256>}, {transform_indices = @transform_4, window_bounds = array<i64: 3, 256>}, {transform_indices = @transform_5, window_bounds = array<i64: 3, 256>}, {transform_indices = @transform_6, window_bounds = array<i64: 3, 256>}, {transform_indices = @transform_7, window_bounds = array<i64: 1, 256>}, {transform_indices = @transform_8, window_bounds = array<i64: 1, 256>}, {transform_indices = @transform_9, window_bounds = array<i64: 1, 256>}]} {
    %c0 = arith.constant 0 : index
    %c0_0 = arith.constant 0 : index
    %0 = vector.load %arg1[%c0, %c0_0] : memref<3x256xf32, #tpu.memory_space<vmem>>, vector<1x256xf32>
    %c0_1 = arith.constant 0 : index
    %c0_2 = arith.constant 0 : index
    %1 = vector.load %arg2[%c0_1, %c0_2] : memref<3x256xf32, #tpu.memory_space<vmem>>, vector<1x256xf32>
    %2 = math.absf %1 : vector<1x256xf32>
    %cst = arith.constant 1.000000e-10 : f32
    %3 = vector.broadcast %cst : f32 to vector<1x256xf32>
    %4 = arith.cmpf olt, %2, %3 : vector<1x256xf32>
    %cst_3 = arith.constant 0.000000e+00 : f32
    %5 = vector.broadcast %cst_3 : f32 to vector<1x256xf32>
    %6 = arith.cmpf oge, %1, %5 : vector<1x256xf32>
    %cst_4 = arith.constant 1.000000e-10 : f32
    %cst_5 = arith.constant -1.000000e-10 : f32
    %7 = vector.broadcast %cst_4 : f32 to vector<1x256xf32>
    %8 = vector.broadcast %cst_5 : f32 to vector<1x256xf32>
    %9 = arith.select %6, %7, %8 : vector<1x256xi1>, vector<1x256xf32>
    %10 = arith.select %4, %9, %1 : vector<1x256xi1>, vector<1x256xf32>
    %cst_6 = arith.constant 1.000000e+00 : f32
    %11 = vector.broadcast %cst_6 : f32 to vector<1x256xf32>
    %12 = arith.divf %11, %10 : vector<1x256xf32>
    %cst_7 = arith.constant -1.000000e+00 : f32
    %13 = vector.broadcast %cst_7 : f32 to vector<1x256xf32>
    %14 = arith.subf %13, %0 : vector<1x256xf32>
    %15 = arith.mulf %14, %12 : vector<1x256xf32>
    %cst_8 = arith.constant 1.000000e+00 : f32
    %16 = vector.broadcast %cst_8 : f32 to vector<1x256xf32>
    %17 = arith.subf %16, %0 : vector<1x256xf32>
    %18 = arith.mulf %17, %12 : vector<1x256xf32>
    %19 = arith.minimumf %15, %18 : vector<1x256xf32>
    %20 = arith.maximumf %15, %18 : vector<1x256xf32>
    %c1 = arith.constant 1 : index
    %c0_9 = arith.constant 0 : index
    %21 = vector.load %arg1[%c1, %c0_9] : memref<3x256xf32, #tpu.memory_space<vmem>>, vector<1x256xf32>
    %c1_10 = arith.constant 1 : index
    %c0_11 = arith.constant 0 : index
    %22 = vector.load %arg2[%c1_10, %c0_11] : memref<3x256xf32, #tpu.memory_space<vmem>>, vector<1x256xf32>
    %23 = math.absf %22 : vector<1x256xf32>
    %cst_12 = arith.constant 1.000000e-10 : f32
    %24 = vector.broadcast %cst_12 : f32 to vector<1x256xf32>
    %25 = arith.cmpf olt, %23, %24 : vector<1x256xf32>
    %cst_13 = arith.constant 0.000000e+00 : f32
    %26 = vector.broadcast %cst_13 : f32 to vector<1x256xf32>
    %27 = arith.cmpf oge, %22, %26 : vector<1x256xf32>
    %cst_14 = arith.constant 1.000000e-10 : f32
    %cst_15 = arith.constant -1.000000e-10 : f32
    %28 = vector.broadcast %cst_14 : f32 to vector<1x256xf32>
    %29 = vector.broadcast %cst_15 : f32 to vector<1x256xf32>
    %30 = arith.select %27, %28, %29 : vector<1x256xi1>, vector<1x256xf32>
    %31 = arith.select %25, %30, %22 : vector<1x256xi1>, vector<1x256xf32>
    %cst_16 = arith.constant 1.000000e+00 : f32
    %32 = vector.broadcast %cst_16 : f32 to vector<1x256xf32>
    %33 = arith.divf %32, %31 : vector<1x256xf32>
    %cst_17 = arith.constant -5.000000e-01 : f32
    %34 = vector.broadcast %cst_17 : f32 to vector<1x256xf32>
    %35 = arith.subf %34, %21 : vector<1x256xf32>
    %36 = arith.mulf %35, %33 : vector<1x256xf32>
    %cst_18 = arith.constant 5.000000e-01 : f32
    %37 = vector.broadcast %cst_18 : f32 to vector<1x256xf32>
    %38 = arith.subf %37, %21 : vector<1x256xf32>
    %39 = arith.mulf %38, %33 : vector<1x256xf32>
    %40 = arith.minimumf %36, %39 : vector<1x256xf32>
    %41 = arith.maximumf %36, %39 : vector<1x256xf32>
    %42 = arith.maximumf %19, %40 : vector<1x256xf32>
    %43 = arith.minimumf %20, %41 : vector<1x256xf32>
    %c2 = arith.constant 2 : index
    %c0_19 = arith.constant 0 : index
    %44 = vector.load %arg1[%c2, %c0_19] : memref<3x256xf32, #tpu.memory_space<vmem>>, vector<1x256xf32>
    %c2_20 = arith.constant 2 : index
    %c0_21 = arith.constant 0 : index
    %45 = vector.load %arg2[%c2_20, %c0_21] : memref<3x256xf32, #tpu.memory_space<vmem>>, vector<1x256xf32>
    %46 = math.absf %45 : vector<1x256xf32>
    %cst_22 = arith.constant 1.000000e-10 : f32
    %47 = vector.broadcast %cst_22 : f32 to vector<1x256xf32>
    %48 = arith.cmpf olt, %46, %47 : vector<1x256xf32>
    %cst_23 = arith.constant 0.000000e+00 : f32
    %49 = vector.broadcast %cst_23 : f32 to vector<1x256xf32>
    %50 = arith.cmpf oge, %45, %49 : vector<1x256xf32>
    %cst_24 = arith.constant 1.000000e-10 : f32
    %cst_25 = arith.constant -1.000000e-10 : f32
    %51 = vector.broadcast %cst_24 : f32 to vector<1x256xf32>
    %52 = vector.broadcast %cst_25 : f32 to vector<1x256xf32>
    %53 = arith.select %50, %51, %52 : vector<1x256xi1>, vector<1x256xf32>
    %54 = arith.select %48, %53, %45 : vector<1x256xi1>, vector<1x256xf32>
    %cst_26 = arith.constant 1.000000e+00 : f32
    %55 = vector.broadcast %cst_26 : f32 to vector<1x256xf32>
    %56 = arith.divf %55, %54 : vector<1x256xf32>
    %cst_27 = arith.constant -1.000000e+00 : f32
    %57 = vector.broadcast %cst_27 : f32 to vector<1x256xf32>
    %58 = arith.subf %57, %44 : vector<1x256xf32>
    %59 = arith.mulf %58, %56 : vector<1x256xf32>
    %cst_28 = arith.constant 1.000000e+00 : f32
    %60 = vector.broadcast %cst_28 : f32 to vector<1x256xf32>
    %61 = arith.subf %60, %44 : vector<1x256xf32>
    %62 = arith.mulf %61, %56 : vector<1x256xf32>
    %63 = arith.minimumf %59, %62 : vector<1x256xf32>
    %64 = arith.maximumf %59, %62 : vector<1x256xf32>
    %65 = arith.maximumf %42, %63 : vector<1x256xf32>
    %66 = arith.minimumf %43, %64 : vector<1x256xf32>
    %cst_29 = arith.constant 2.000000e-01 : f32
    %67 = vector.broadcast %cst_29 : f32 to vector<1x256xf32>
    %68 = arith.maximumf %65, %67 : vector<1x256xf32>
    %cst_30 = arith.constant 9.99999997E-7 : f32
    %69 = vector.broadcast %cst_30 : f32 to vector<1x256xf32>
    %70 = arith.addf %68, %69 : vector<1x256xf32>
    %71 = arith.maximumf %66, %70 : vector<1x256xf32>
    %c0_31 = arith.constant 0 : index
    %c0_32 = arith.constant 0 : index
    %72 = vector.load %arg3[%c0_31, %c0_32] : memref<1x256xf32, #tpu.memory_space<vmem>>, vector<1x256xf32>
    %c0_33 = arith.constant 0 : index
    %c0_34 = arith.constant 0 : index
    %73 = vector.load %arg5[%c0_33, %c0_34] : memref<3x256xf32, #tpu.memory_space<vmem>>, vector<3x256xf32>
    %cst_35 = arith.constant 1.000000e+00 : f32
    %74 = vector.broadcast %cst_35 : f32 to vector<1x256xf32>
    %75 = arith.subf %74, %72 : vector<1x256xf32>
    %c0_36 = arith.constant 0 : index
    %c0_37 = arith.constant 0 : index
    %76 = vector.load %arg6[%c0_36, %c0_37] : memref<3x256xf32, #tpu.memory_space<vmem>>, vector<3x256xf32>
    %77 = vector.broadcast %75 : vector<1x256xf32> to vector<3x256xf32>
    %78 = arith.mulf %77, %76 : vector<3x256xf32>
    %79 = arith.addf %73, %78 : vector<3x256xf32>
    %cst_38 = arith.constant 0.000000e+00 : f32
    %cst_39 = arith.constant 1.000000e+00 : f32
    %80 = vector.broadcast %cst_38 : f32 to vector<3x256xf32>
    %81 = arith.maximumf %80, %79 : vector<3x256xf32>
    %82 = vector.broadcast %cst_39 : f32 to vector<3x256xf32>
    %83 = arith.minimumf %82, %81 : vector<3x256xf32>
    %c0_40 = arith.constant 0 : index
    %c0_41 = arith.constant 0 : index
    %84 = vector.load %arg4[%c0_40, %c0_41] : memref<1x256xf32, #tpu.memory_space<vmem>>, vector<1x256xf32>
    %85 = arith.subf %84, %68 : vector<1x256xf32>
    %cst_42 = arith.constant 0.000000e+00 : f32
    %86 = vector.broadcast %cst_42 : f32 to vector<1x256xf32>
    %87 = arith.maximumf %85, %86 : vector<1x256xf32>
    %88 = arith.subf %71, %68 : vector<1x256xf32>
    %89 = arith.divf %87, %88 : vector<1x256xf32>
    %c0_43 = arith.constant 0 : index
    %c0_44 = arith.constant 0 : index
    %90 = vector.load %arg7[%c0_43, %c0_44] : memref<3x256xf32, #tpu.memory_space<vmem>>, vector<3x256xf32>
    tpu.vector_store %arg7[%c0_43, %c0_44], %83 {strides = array<i32>} : memref<3x256xf32, #tpu.memory_space<vmem>>, vector<3x256xf32>,
    %c0_45 = arith.constant 0 : index
    %c0_46 = arith.constant 0 : index
    %91 = vector.load %arg8[%c0_45, %c0_46] : memref<1x256xf32, #tpu.memory_space<vmem>>, vector<1x256xf32>
    tpu.vector_store %arg8[%c0_45, %c0_46], %89 {strides = array<i32>} : memref<1x256xf32, #tpu.memory_space<vmem>>, vector<1x256xf32>,
    %c0_47 = arith.constant 0 : index
    %c0_48 = arith.constant 0 : index
    %92 = vector.load %arg9[%c0_47, %c0_48] : memref<1x256xf32, #tpu.memory_space<vmem>>, vector<1x256xf32>
    tpu.vector_store %arg9[%c0_47, %c0_48], %68 {strides = array<i32>} : memref<1x256xf32, #tpu.memory_space<vmem>>, vector<1x256xf32>,
    %c0_49 = arith.constant 0 : index
    %c0_50 = arith.constant 0 : index
    %93 = vector.load %arg10[%c0_49, %c0_50] : memref<1x256xf32, #tpu.memory_space<vmem>>, vector<1x256xf32>
    tpu.vector_store %arg10[%c0_49, %c0_50], %71 {strides = array<i32>} : memref<1x256xf32, #tpu.memory_space<vmem>>, vector<1x256xf32>,
    return
  }
  func.func @transform_0(%arg0: i32) -> (i32, i32) {
    %c0_i32 = arith.constant 0 : i32
    %c0_i32_0 = arith.constant 0 : i32
    return %c0_i32, %arg0 : i32, i32
  }
  func.func @transform_1(%arg0: i32) -> (i32, i32) {
    %c0_i32 = arith.constant 0 : i32
    %c0_i32_0 = arith.constant 0 : i32
    return %c0_i32, %arg0 : i32, i32
  }
  func.func @transform_2(%arg0: i32) -> (i32, i32) {
    %c0_i32 = arith.constant 0 : i32
    %c0_i32_0 = arith.constant 0 : i32
    return %c0_i32, %arg0 : i32, i32
  }
  func.func @transform_3(%arg0: i32) -> (i32, i32) {
    %c0_i32 = arith.constant 0 : i32
    %c0_i32_0 = arith.constant 0 : i32
    return %c0_i32, %arg0 : i32, i32
  }
  func.func @transform_4(%arg0: i32) -> (i32, i32) {
    %c0_i32 = arith.constant 0 : i32
    %c0_i32_0 = arith.constant 0 : i32
    return %c0_i32, %arg0 : i32, i32
  }
  func.func @transform_5(%arg0: i32) -> (i32, i32) {
    %c0_i32 = arith.constant 0 : i32
    %c0_i32_0 = arith.constant 0 : i32
    return %c0_i32, %arg0 : i32, i32
  }
  func.func @transform_6(%arg0: i32) -> (i32, i32) {
    %c0_i32 = arith.constant 0 : i32
    %c0_i32_0 = arith.constant 0 : i32
    return %c0_i32, %arg0 : i32, i32
  }
  func.func @transform_7(%arg0: i32) -> (i32, i32) {
    %c0_i32 = arith.constant 0 : i32
    %c0_i32_0 = arith.constant 0 : i32
    return %c0_i32, %arg0 : i32, i32
  }
  func.func @transform_8(%arg0: i32) -> (i32, i32) {
    %c0_i32 = arith.constant 0 : i32
    %c0_i32_0 = arith.constant 0 : i32
    return %c0_i32, %arg0 : i32, i32
  }
  func.func @transform_9(%arg0: i32) -> (i32, i32) {
    %c0_i32 = arith.constant 0 : i32
    %c0_i32_0 = arith.constant 0 : i32
    return %c0_i32, %arg0 : i32, i32
  }
}

</mosaic_0001>

<llo_original>
// kernel: tpu_custom_call.1
$region0: #{tpu_custom_call.1}
  #allocation0 [shape = 'u32[]', space=smem, size = 0x4, offset = 0x4, fixed_abs, tag = 'smem constant byte address 0x4 - core index']
  #allocation1 [shape = 'u32[144,128]{1,0:T(1,128)}', space=vmem, size = 0x12000, scoped, tag = 'internal scratch']
  %s0 = inlined_call_operand.hbm [shape: f32[3,256], index: 0, kind: input, shape index: {}]
  %s1 = inlined_call_operand.hbm [shape: f32[3,256], index: 1, kind: input, shape index: {}]
  %s2 = inlined_call_operand.vmem [shape: f32[1,256], index: 2, kind: input, shape index: {}]
  %s3 = inlined_call_operand.hbm [shape: f32[1,256], index: 3, kind: input, shape index: {}]
  %s4 = inlined_call_operand.vmem [shape: f32[3,256], index: 4, kind: input, shape index: {}]
  %s5 = inlined_call_operand.vmem [shape: f32[3,256], index: 5, kind: input, shape index: {}]
  %s6 = inlined_call_operand.hbm [shape: f32[3,256], index: 6, kind: output, shape index: {0}]
  %s7 = inlined_call_operand.hbm [shape: f32[1,256], index: 7, kind: output, shape index: {1}]
  %s8 = inlined_call_operand.hbm [shape: f32[1,256], index: 8, kind: output, shape index: {2}]
  %s9 = inlined_call_operand.hbm [shape: f32[1,256], index: 9, kind: output, shape index: {3}]
  %10 = xla_tuple %s6, %s7, %s8, %s9
  %s11 = sld [smem:[#allocation0]]
  $region70: #{tpu_custom_call.1} parent=0
    _
  %s13 = ssub.s32 1, %s11
  %s14 = scalar_select 0, %s13, %s11
  $region1: #{tpu_custom_call.1} parent=0
    #allocation2 [shape = 'u8[4096]{0}', space=vmem, size = 0x1000, scoped, tag = 'input window, operand 0, single buffered']
    #allocation3 [shape = 's32[1]{0}', space=sflag, size = 0x4, scoped, tag = 'scoped memory for tpu_custom_call.1']
    #allocation4 [shape = 's32[1]{0}', space=sflag, size = 0x4, scoped, tag = 'scoped memory for tpu_custom_call.1']
    #allocation5 [shape = 'u8[4096]{0}', space=vmem, size = 0x1000, scoped, tag = 'input window, operand 1, single buffered']
    #allocation6 [shape = 's32[1]{0}', space=sflag, size = 0x4, scoped, tag = 'scoped memory for tpu_custom_call.1']
    #allocation7 [shape = 'u8[1024]{0}', space=vmem, size = 0x400, scoped, tag = 'input window, operand 3, single buffered']
    #allocation8 [shape = 'u8[4096]{0}', space=vmem, size = 0x1000, scoped, tag = 'output window, operand 0, single buffered']
    #allocation9 [shape = 'u8[1024]{0}', space=vmem, size = 0x400, scoped, tag = 'output window, operand 1, single buffered']
    #allocation10 [shape = 's32[1]{0}', space=sflag, size = 0x4, scoped, tag = 'scoped memory for tpu_custom_call.1']
    #allocation11 [shape = 'u8[1024]{0}', space=vmem, size = 0x400, scoped, tag = 'output window, operand 2, single buffered']
    #allocation12 [shape = 'u8[1024]{0}', space=vmem, size = 0x400, scoped, tag = 'output window, operand 3, single buffered']
    #allocation13 [shape = 's32[1]{0}', space=sflag, size = 0x4, scoped, tag = 'scoped memory for tpu_custom_call.1']
    %15 = vsyncpa [#allocation3], 0
    %16 = vsyncpa [#allocation6], 0
    %17 = vsyncpa [#allocation4], 0
    %18 = vsyncpa [#allocation10], 0
    %19 = vsyncpa [#allocation13], 0
    // Predicated region
    $region2: #{tpu_custom_call.1} parent=1 // pred_check
      _
    $region3: #{tpu_custom_call.1} parent=1 // pred_check_branch
      %21 = sbr.rel (0) target = $region5
    $region4: #{tpu_custom_call.1} parent=1 // pred_region
      %s23 = ssub.s32 128, 128
      %24 = vsyncadd [#allocation3], %s23
      %s26 = sshll.u32 [#allocation2], 4
      %s27 = int_to_ptr.vmem [resolvable:$true] %s26
      %29 = dma.hbm_to_vmem [thread:$0]  %s0, 128, %s27, [#allocation3]
    $region5: #{tpu_custom_call.1} parent=1 // pred_fallthru
      _
    // Predicated region
    $region6: #{tpu_custom_call.1} parent=1 // pred_check
      _
    $region7: #{tpu_custom_call.1} parent=1 // pred_check_branch
      %31 = sbr.rel (0) target = $region9
    $region8: #{tpu_custom_call.1} parent=1 // pred_region
      %s33 = ssub.s32 128, 128
      %34 = vsyncadd [#allocation6], %s33
      %s36 = sshll.u32 [#allocation5], 4
      %s37 = int_to_ptr.vmem [resolvable:$true] %s36
      %39 = dma.hbm_to_vmem [thread:$0]  %s1, 128, %s37, [#allocation6]
    $region9: #{tpu_custom_call.1} parent=1 // pred_fallthru
      _
    // Predicated region
    $region10: #{tpu_custom_call.1} parent=1 // pred_check
      _
    $region11: #{tpu_custom_call.1} parent=1 // pred_check_branch
      %41 = sbr.rel (0) target = $region13
    $region12: #{tpu_custom_call.1} parent=1 // pred_region
      _
    $region13: #{tpu_custom_call.1} parent=1 // pred_fallthru
      _
    // Predicated region
    $region14: #{tpu_custom_call.1} parent=1 // pred_check
      _
    $region15: #{tpu_custom_call.1} parent=1 // pred_check_branch
      %43 = sbr.rel (0) target = $region17
    $region16: #{tpu_custom_call.1} parent=1 // pred_region
      %s45 = ssub.s32 32, 32
      %46 = vsyncadd [#allocation6], %s45
      %s48 = sshll.u32 [#allocation7], 4
      %s49 = int_to_ptr.vmem [resolvable:$true] %s48
      %51 = dma.hbm_to_vmem [thread:$0]  %s3, 32, %s49, [#allocation6]
    $region17: #{tpu_custom_call.1} parent=1 // pred_fallthru
      _
    // Predicated region
    $region18: #{tpu_custom_call.1} parent=1 // pred_check
      _
    $region19: #{tpu_custom_call.1} parent=1 // pred_check_branch
      %53 = sbr.rel (0) target = $region21
    $region20: #{tpu_custom_call.1} parent=1 // pred_region
      _
    $region21: #{tpu_custom_call.1} parent=1 // pred_fallthru
      _
    // Predicated region
    $region22: #{tpu_custom_call.1} parent=1 // pred_check
      _
    $region23: #{tpu_custom_call.1} parent=1 // pred_check_branch
      %55 = sbr.rel (0) target = $region25
    $region24: #{tpu_custom_call.1} parent=1 // pred_region
      _
    $region25: #{tpu_custom_call.1} parent=1 // pred_fallthru
      _
    // Predicated region
    $region26: #{tpu_custom_call.1} parent=1 // pred_check
      _
    $region27: #{tpu_custom_call.1} parent=1 // pred_check_branch
      %57 = sbr.rel (0) target = $region29
    $region28: #{tpu_custom_call.1} parent=1 // pred_region
      %58 = dma.done [#allocation3], 128
    $region29: #{tpu_custom_call.1} parent=1 // pred_fallthru
      _
    // Predicated region
    $region30: #{tpu_custom_call.1} parent=1 // pred_check
      _
    $region31: #{tpu_custom_call.1} parent=1 // pred_check_branch
      %60 = sbr.rel (0) target = $region33
    $region32: #{tpu_custom_call.1} parent=1 // pred_region
      %61 = dma.done [#allocation6], 128
    $region33: #{tpu_custom_call.1} parent=1 // pred_fallthru
      _
    // Predicated region
    $region34: #{tpu_custom_call.1} parent=1 // pred_check
      _
    $region35: #{tpu_custom_call.1} parent=1 // pred_check_branch
      %63 = sbr.rel (0) target = $region37
    $region36: #{tpu_custom_call.1} parent=1 // pred_region
      %64 = dma.done [#allocation6], 32
    $region37: #{tpu_custom_call.1} parent=1 // pred_fallthru
      _
    %v65 = vld [vmem:[#allocation2] ss:$4 sm:$0x3]
    %v66 = vld [vmem:[#allocation5] ss:$4 sm:$0x3]
    %v67 = vand.u32 2147483647, %v66
    %vm68 = vcmp.lt.f32.partialorder %v67, 1e-10
    %vm69 = vcmp.ge.f32.partialorder %v66, 0.0
    %v70 = vsel %vm69, 1e-10, -1e-10
    %v71 = vsel %vm68, %v70, %v66
    %v72 = vrcp.pop %v71
    %v73 = vmul.f32 1.0, %v72
    %v74 = vsub.f32 -1.0, %v65
    %v75 = vmul.f32 %v74, %v73
    %v76 = vsub.f32 1.0, %v65
    %v77 = vmul.f32 %v76, %v73
    %v78 = vmin.f32 %v75, %v77
    %v79 = vmax.f32 %v75, %v77
    %s80 = scalar_lea.vmem [#allocation2], 1
    %v81 = vld [vmem:[%s80] ss:$4 sm:$0x3]
    %s82 = scalar_lea.vmem [#allocation5], 1
    %v83 = vld [vmem:[%s82] ss:$4 sm:$0x3]
    %v84 = vand.u32 2147483647, %v83
    %vm85 = vcmp.lt.f32.partialorder %v84, 1e-10
    %vm86 = vcmp.ge.f32.partialorder %v83, 0.0
    %v87 = vsel %vm86, 1e-10, -1e-10
    %v88 = vsel %vm85, %v87, %v83
    %v89 = vrcp.pop %v88
    %v90 = vmul.f32 1.0, %v89
    %v91 = vsub.f32 -0.5, %v81
    %v92 = vmul.f32 %v91, %v90
    %v93 = vsub.f32 0.5, %v81
    %v94 = vmul.f32 %v93, %v90
    %v95 = vmin.f32 %v92, %v94
    %v96 = vmax.f32 %v92, %v94
    %v97 = vmax.f32 %v78, %v95
    %v98 = vmin.f32 %v79, %v96
    %s99 = scalar_lea.vmem [#allocation2], 2
    %v100 = vld [vmem:[%s99] ss:$4 sm:$0x3]
    %s101 = scalar_lea.vmem [#allocation5], 2
    %v102 = vld [vmem:[%s101] ss:$4 sm:$0x3]
    %v103 = vand.u32 2147483647, %v102
    %vm104 = vcmp.lt.f32.partialorder %v103, 1e-10
    %vm105 = vcmp.ge.f32.partialorder %v102, 0.0
    %v106 = vsel %vm105, 1e-10, -1e-10
    %v107 = vsel %vm104, %v106, %v102
    %v108 = vrcp.pop %v107
    %v109 = vmul.f32 1.0, %v108
    %v110 = vsub.f32 -1.0, %v100
    %v111 = vmul.f32 %v110, %v109
    %v112 = vsub.f32 1.0, %v100
    %v113 = vmul.f32 %v112, %v109
    %v114 = vmin.f32 %v111, %v113
    %v115 = vmax.f32 %v111, %v113
    %v116 = vmax.f32 %v97, %v114
    %v117 = vmin.f32 %v98, %v115
    %v118 = vmax.f32 %v116, 0.2
    %v119 = vadd.f32 %v118, 1e-06
    %v120 = vmax.f32 %v117, %v119
    %v121 = vld [vmem:[%s2] sm:$0x3]
    %v122 = vld [vmem:[%s4] sm:$0x77]
    %v123 = vsub.f32 1.0, %v121
    %v124 = vld [vmem:[%s5] sm:$0x77]
    %v126 = vlaneseq
    %v127 = vshrl.u32 %v126, 7
    %v128 = vsub.s32 0, %v127
    %v129 = vrot.slane %v123, %v128
    %v130 = vlaneseq
    %v131 = vshrl.u32 %v130, 7
    %v132 = vsub.s32 1, %v131
    %v133 = vrot.slane %v123, %v132
    %v137 = vcombine.high %v124, %v124
    %v139 = vmul.f32 %v129, %v124
    %v140 = vmul.f32 %v133, %v137
    %v143 = vcombine.low %v139, %v140
    %v145 = vadd.f32 %v122, %v143
    %v146 = vmax.f32 %v145, 0.0
    %v147 = vmin.f32 %v146, 1.0
    %v148 = vld [vmem:[#allocation7] sm:$0x3]
    %v149 = vsub.f32 %v148, %v118
    %v150 = vmax.f32 %v149, 0.0
    %v151 = vsub.f32 %v120, %v118
    %v152 = vrcp.pop %v151
    %v153 = vmul.f32 %v150, %v152
    %154 = vst [vmem:[#allocation8] sm:$0x77] %v147
    %v155 = vlaneseq
    %vm156 = vcmp.ge.s32.totalorder %v155, 0
    %vm157 = vcmp.lt.s32.totalorder %v155, 256
    %vm158 = vmand %vm156, %vm157
    %159 = vst.msk [vmem:[#allocation9] sm:$0x3] %vm158, %v153
    %160 = vst.msk [vmem:[#allocation11] sm:$0x3] %vm158, %v118
    %161 = vst.msk [vmem:[#allocation12] sm:$0x3] %vm158, %v120
    // Predicated region
    $region38: #{tpu_custom_call.1} parent=1 // pred_check
      _
    $region39: #{tpu_custom_call.1} parent=1 // pred_check_branch
      %163 = sbr.rel (0) target = $region41
    $region40: #{tpu_custom_call.1} parent=1 // pred_region
      %s165 = ssub.s32 128, 128
      %166 = vsyncadd [#allocation4], %s165
      %s168 = sshll.u32 [#allocation8], 4
      %s169 = int_to_ptr.vmem [resolvable:$true] %s168
      %171 = dma.vmem_to_hbm [thread:$0]  %s169, 128, %s6, [#allocation4]
    $region41: #{tpu_custom_call.1} parent=1 // pred_fallthru
      _
    // Predicated region
    $region42: #{tpu_custom_call.1} parent=1 // pred_check
      _
    $region43: #{tpu_custom_call.1} parent=1 // pred_check_branch
      %173 = sbr.rel (0) target = $region45
    $region44: #{tpu_custom_call.1} parent=1 // pred_region
      %s175 = ssub.s32 32, 32
      %176 = vsyncadd [#allocation10], %s175
      %s178 = sshll.u32 [#allocation9], 4
      %s179 = int_to_ptr.vmem [resolvable:$true] %s178
      %181 = dma.vmem_to_hbm [thread:$0]  %s179, 32, %s7, [#allocation10]
    $region45: #{tpu_custom_call.1} parent=1 // pred_fallthru
      _
    // Predicated region
    $region46: #{tpu_custom_call.1} parent=1 // pred_check
      _
    $region47: #{tpu_custom_call.1} parent=1 // pred_check_branch
      %183 = sbr.rel (0) target = $region49
    $region48: #{tpu_custom_call.1} parent=1 // pred_region
      %s185 = ssub.s32 32, 32
      %186 = vsyncadd [#allocation10], %s185
      %s188 = sshll.u32 [#allocation11], 4
      %s189 = int_to_ptr.vmem [resolvable:$true] %s188
      %191 = dma.vmem_to_hbm [thread:$0]  %s189, 32, %s8, [#allocation10]
    $region49: #{tpu_custom_call.1} parent=1 // pred_fallthru
      _
    // Predicated region
    $region50: #{tpu_custom_call.1} parent=1 // pred_check
      _
    $region51: #{tpu_custom_call.1} parent=1 // pred_check_branch
      %193 = sbr.rel (0) target = $region53
    $region52: #{tpu_custom_call.1} parent=1 // pred_region
      %s195 = ssub.s32 32, 32
      %196 = vsyncadd [#allocation13], %s195
      %s198 = sshll.u32 [#allocation12], 4
      %s199 = int_to_ptr.vmem [resolvable:$true] %s198
      %201 = dma.vmem_to_hbm [thread:$0]  %s199, 32, %s9, [#allocation13]
    $region53: #{tpu_custom_call.1} parent=1 // pred_fallthru
      _
    // Predicated region
    $region54: #{tpu_custom_call.1} parent=1 // pred_check
      _
    $region55: #{tpu_custom_call.1} parent=1 // pred_check_branch
      %203 = sbr.rel (0) target = $region57
    $region56: #{tpu_custom_call.1} parent=1 // pred_region
      %204 = dma.done [#allocation4], 128
    $region57: #{tpu_custom_call.1} parent=1 // pred_fallthru
      _
    // Predicated region
    $region58: #{tpu_custom_call.1} parent=1 // pred_check
      _
    $region59: #{tpu_custom_call.1} parent=1 // pred_check_branch
      %206 = sbr.rel (0) target = $region61
    $region60: #{tpu_custom_call.1} parent=1 // pred_region
      %207 = dma.done [#allocation10], 32
    $region61: #{tpu_custom_call.1} parent=1 // pred_fallthru
      _
    // Predicated region
    $region62: #{tpu_custom_call.1} parent=1 // pred_check
      _
    $region63: #{tpu_custom_call.1} parent=1 // pred_check_branch
      %209 = sbr.rel (0) target = $region65
    $region64: #{tpu_custom_call.1} parent=1 // pred_region
      %210 = dma.done [#allocation10], 32
    $region65: #{tpu_custom_call.1} parent=1 // pred_fallthru
      _
    // Predicated region
    $region66: #{tpu_custom_call.1} parent=1 // pred_check
      _
    $region67: #{tpu_custom_call.1} parent=1 // pred_check_branch
      %212 = sbr.rel (0) target = $region69
    $region68: #{tpu_custom_call.1} parent=1 // pred_region
      %213 = dma.done [#allocation13], 32
    $region69: #{tpu_custom_call.1} parent=1 // pred_fallthru
      _
    %214 = vsyncpa [#allocation3], 1
    %215 = vsyncpa [#allocation6], 1
    %216 = vsyncpa [#allocation4], 1
    %217 = vsyncpa [#allocation10], 1
    %218 = vsyncpa [#allocation13], 1

</llo_original>
